<compile_context>
chip_gen: v5e
topology: v5e:2x2
jax: 0.10.0
libtpu: 0.0.40
codegen_flags: <defaults>
</compile_context>

<pallas_src>
import functools

import jax
import jax.numpy as jnp
from jax.experimental import pallas as pl
from jax.experimental.pallas import tpu as pltpu


def _round_up(n, m):
    return ((n + m - 1) // m) * m


def _cdiv(a, b):
    return (a + b - 1) // b


def _sublane_multiple(*dtypes):
    m = 8
    for dt in dtypes:
        it = jnp.dtype(dt).itemsize
        if it == 2:
            m = max(m, 16)
        elif it == 1:
            m = max(m, 32)
    return m


_VMEM_BUDGET_CACHE = None


def _vmem_budget_bytes():
    """Generation-aware VMEM budget with headroom for Mosaic scratch/buffers."""
    global _VMEM_BUDGET_CACHE
    if _VMEM_BUDGET_CACHE is None:
        try:
            cap = int(pltpu.get_tpu_info().vmem_capacity_bytes)
        except Exception:
            cap = 64 * 1024 * 1024          # conservative (v7x per-TC size)
        _VMEM_BUDGET_CACHE = min((cap * 3) // 4, 110 * 1024 * 1024)
    return _VMEM_BUDGET_CACHE


def _align_row_tile(t, sub):
    if t >= 512:
        return (t // 256) * 256
    if t >= 256:
        return (t // 128) * 128
    return max(sub, (t // sub) * sub)


def _maybe_split_for_dual_tc(tm_eff, m_rounded, sub, tm_requested):
    """Guarantee >=2 row blocks (v7x dual-TC) when there is enough work."""
    if tm_requested is not None:
        return tm_eff
    if _cdiv(m_rounded, tm_eff) == 1 and m_rounded >= 512:
        return _round_up(_cdiv(m_rounded, 2), sub)
    return tm_eff


def _pad2(a, rows, cols):
    pr, pc = rows - a.shape[0], cols - a.shape[1]
    if pr == 0 and pc == 0:
        return a
    return jnp.pad(a, ((0, pr), (0, pc)))


def _pad_row(b, cols):
    if b.shape[0] != cols:
        b = jnp.pad(b, (0, cols - b.shape[0]))
    return b.reshape(1, cols)


# --------------------------------------------------------------------------
# Kernels
# --------------------------------------------------------------------------
def _ffn_resident_kernel(x_ref, w1_ref, b1_ref, w2_ref, b2_ref, o_ref):
    # Whole w1/w2 are VMEM-resident (constant block index); one row tile per
    # grid step, both GEMMs in a single pass, f32 accumulation on the MXU.
    h = jnp.dot(x_ref[...], w1_ref[...], preferred_element_type=jnp.float32)
    h = jnp.maximum(h + b1_ref[...].astype(jnp.float32), 0.0)
    y = jnp.dot(h.astype(w2_ref.dtype), w2_ref[...],
                preferred_element_type=jnp.float32)
    o_ref[...] = (y + b2_ref[...].astype(jnp.float32)).astype(o_ref.dtype)


def _ffn_stream_kernel(x_ref, w1_ref, b1_ref, w2_ref, b2_ref, o_ref, *scratch):
    # d_ff streamed on the last ("arbitrary") grid axis.  When the output is
    # f32 we accumulate directly into o_ref (its block index is constant in j,
    # so it stays VMEM-resident); otherwise an f32 scratch is provided.
    acc_ref = scratch[0] if scratch else o_ref
    j = pl.program_id(1)

    @pl.when(j == 0)
    def _():
        acc_ref[...] = jnp.zeros_like(acc_ref)

    h = jnp.dot(x_ref[...], w1_ref[...], preferred_element_type=jnp.float32)
    h = jnp.maximum(h + b1_ref[...].astype(jnp.float32), 0.0)
    acc_ref[...] += jnp.dot(h.astype(w2_ref.dtype), w2_ref[...],
                            preferred_element_type=jnp.float32)

    @pl.when(j == pl.num_programs(1) - 1)
    def _():
        o_ref[...] = (acc_ref[...]
                      + b2_ref[...].astype(jnp.float32)).astype(o_ref.dtype)


# --------------------------------------------------------------------------
# Wrapper
# --------------------------------------------------------------------------
@functools.partial(jax.jit, static_argnames=("tm", "tff", "force_stream"))
def position_wise_ffn(x, w1, b1, w2, b2, *, tm=None, tff=None,
                      force_stream=False):
    """y = relu(x @ w1 + b1) @ w2 + b2, position-wise over leading dims.

    x: (..., d_model); w1: (d_model, d_ff), b1: (d_ff,);
    w2: (d_ff, d_model), b2: (d_model,).
    tm / tff: optional row / d_ff tile overrides (auto-planned if None).
    force_stream: force the streaming (d_ff-tiled) path even if the weights
    would fit VMEM (mainly for testing).
    """
    out_dtype = x.dtype
    d_model = x.shape[-1]
    d_ff = w1.shape[-1]
    lead = x.shape[:-1]

    x2 = x.reshape(-1, d_model)
    M = x2.shape[0]

    x_it = jnp.dtype(x.dtype).itemsize
    w_it = jnp.dtype(w1.dtype).itemsize
    o_it = jnp.dtype(out_dtype).itemsize
    sub = _sublane_multiple(x.dtype, out_dtype)

    d_model_p = _round_up(d_model, 128)
    d_ff_p = _round_up(d_ff, 128)
    M_r = _round_up(M, sub)

    budget = _vmem_budget_bytes()
    use_acc_scratch = jnp.dtype(out_dtype) != jnp.dtype(jnp.float32)

    # ---- weight-residency decision (double buffers counted conservatively).
    weight_vmem = 2 * (2 * d_model_p * d_ff_p * w_it)        # w1 + w2
    bias_vmem = 2 * (d_ff_p + d_model_p) * w_it
    per_row_resident = (2 * d_model_p * x_it                  # x tile (x2 bufs)
                        + 2 * d_model_p * o_it                # out tile (x2)
                        + d_ff_p * (4 + w_it)                 # h f32 + cast copy
                        + d_model_p * 4)                      # f32 y before cast
    tm_resident_max = (budget - weight_vmem - bias_vmem) // per_row_resident
    resident = (not force_stream) and tm_resident_max >= min(M_r, 128)

    if resident:
        d_ff_pp = d_ff_p                                      # full d_ff, one pass
        tff_eff = d_ff_pp
        tm_cap = tm if tm is not None else 512
        tm_eff = _align_row_tile(
            min(tm_cap, int(tm_resident_max), M_r, 1024), sub)
        tm_eff = _maybe_split_for_dual_tc(tm_eff, M_r, sub, tm)
    else:
        def stream_tile_bytes(tmc, tffc):
            return (2 * tmc * d_model_p * x_it                # x tiles
                    + 2 * d_model_p * tffc * w_it             # w1 tiles
                    + 2 * tffc * d_model_p * w_it             # w2 tiles
                    + 2 * (tffc + d_model_p) * w_it           # bias tiles
                    + 2 * tmc * d_model_p * o_it              # out tiles
                    + (tmc * d_model_p * 4 if use_acc_scratch else 0)
                    + tmc * tffc * (4 + w_it))                # h f32 + cast copy

        tm_cands = ([tm] if tm is not None
                    else [1024, 768, 512, 384, 256, 128, 64, 32, 16, 8])
        tff_cands = ([tff] if tff is not None
                     else [2048, 1024, 512, 256, 128])
        tm_eff, tff_eff = sub, 128
        found = False
        for tmc in tm_cands:                  # biggest tm first: intensity ~ tm
            tmc_e = max(sub, min(_round_up(tmc, sub), M_r))
            for tffc in tff_cands:            # biggest tff: fewer acc RMW steps
                tffc_e = min(_round_up(tffc, 128), d_ff_p)
                if stream_tile_bytes(tmc_e, tffc_e) <= budget:
                    tm_eff, tff_eff = tmc_e, tffc_e
                    found = True
                    break
            if found:
                break
        tm_eff = _maybe_split_for_dual_tc(tm_eff, M_r, sub, tm)
        d_ff_pp = _round_up(d_ff_p, tff_eff)

    M_p = _round_up(M, tm_eff)
    n_row_blocks = M_p // tm_eff

    # Zero-padding (skipped when already aligned).  Zeros keep the valid
    # region exact: padded d_ff columns give h=relu(0+0)=0, padded w2 rows
    # are 0, padded rows/columns are sliced off below.
    # NOTE: for hot training/serving loops, pre-pad the weights once outside
    # this function and pass aligned arrays so these pads are no-ops.
    x_p = _pad2(x2, M_p, d_model_p)
    w1_p = _pad2(w1, d_model_p, d_ff_pp)
    b1_p = _pad_row(b1, d_ff_pp)
    w2_p = _pad2(w2, d_ff_pp, d_model_p)
    b2_p = _pad_row(b2, d_model_p)

    # Advisory cost estimate reflecting the real weight re-read count.
    weight_reads = 1 if resident else n_row_blocks
    flops = 2 * 2 * M_p * d_model_p * d_ff_pp
    bytes_accessed = (M_p * d_model_p * x_it
                      + weight_reads * 2 * d_model_p * d_ff_pp * w_it
                      + (d_ff_pp + d_model_p) * w_it
                      + M_p * d_model_p * o_it)
    cost = pl.CostEstimate(flops=flops, transcendentals=0,
                           bytes_accessed=bytes_accessed)

    if resident:
        out = pl.pallas_call(
            _ffn_resident_kernel,
            out_shape=jax.ShapeDtypeStruct((M_p, d_model_p), out_dtype),
            grid_spec=pltpu.PrefetchScalarGridSpec(
                num_scalar_prefetch=0,
                grid=(n_row_blocks,),
                in_specs=[
                    pl.BlockSpec((tm_eff, d_model_p), lambda i: (i, 0)),   # x
                    pl.BlockSpec((d_model_p, d_ff_pp), lambda i: (0, 0)),  # w1
                    pl.BlockSpec((1, d_ff_pp), lambda i: (0, 0)),          # b1
                    pl.BlockSpec((d_ff_pp, d_model_p), lambda i: (0, 0)),  # w2
                    pl.BlockSpec((1, d_model_p), lambda i: (0, 0)),        # b2
                ],
                out_specs=pl.BlockSpec((tm_eff, d_model_p), lambda i: (i, 0)),
            ),
            compiler_params=pltpu.CompilerParams(
                dimension_semantics=("parallel",),
                vmem_limit_bytes=budget,
            ),
            cost_estimate=cost,
        )(x_p, w1_p, b1_p, w2_p, b2_p)
    else:
        scratch = ([pltpu.VMEM((tm_eff, d_model_p), jnp.float32)]
                   if use_acc_scratch else [])
        out = pl.pallas_call(
            _ffn_stream_kernel,
            out_shape=jax.ShapeDtypeStruct((M_p, d_model_p), out_dtype),
            grid_spec=pltpu.PrefetchScalarGridSpec(
                num_scalar_prefetch=0,
                grid=(n_row_blocks, d_ff_pp // tff_eff),
                in_specs=[
                    pl.BlockSpec((tm_eff, d_model_p), lambda i, j: (i, 0)),   # x
                    pl.BlockSpec((d_model_p, tff_eff), lambda i, j: (0, j)),  # w1
                    pl.BlockSpec((1, tff_eff), lambda i, j: (0, j)),          # b1
                    pl.BlockSpec((tff_eff, d_model_p), lambda i, j: (j, 0)),  # w2
                    pl.BlockSpec((1, d_model_p), lambda i, j: (0, 0)),        # b2
                ],
                out_specs=pl.BlockSpec((tm_eff, d_model_p), lambda i, j: (i, 0)),
                scratch_shapes=scratch,
            ),
            compiler_params=pltpu.CompilerParams(
                dimension_semantics=("parallel", "arbitrary"),
                vmem_limit_bytes=budget,
            ),
            cost_estimate=cost,
        )(x_p, w1_p, b1_p, w2_p, b2_p)

    out = out[:M, :d_model]
    return out.reshape(*lead, d_model)


def init_params(key, d_model, d_ff, dtype=jnp.float32):
    """nn.Linear-style init (uniform +/- 1/sqrt(fan_in)).
    Weights stored as (in_features, out_features) — PyTorch weight transposed."""
    k1, k2, k3, k4 = jax.random.split(key, 4)
    bound1 = 1.0 / (d_model ** 0.5)
    bound2 = 1.0 / (d_ff ** 0.5)
    w1 = jax.random.uniform(k1, (d_model, d_ff), dtype, -bound1, bound1)
    b1 = jax.random.uniform(k2, (d_ff,), dtype, -bound1, bound1)
    w2 = jax.random.uniform(k3, (d_ff, d_model), dtype, -bound2, bound2)
    b2 = jax.random.uniform(k4, (d_model,), dtype, -bound2, bound2)
    return w1, b1, w2, b2


if __name__ == "__main__":
    key = jax.random.PRNGKey(0)
    kx, kp, kx2, kp2 = jax.random.split(key, 4)

    # 1) Small demo shapes (resident-weights path), f32.
    d_model, d_ff = 32, 64
    batch, seq = 2, 8
    x = jax.random.normal(kx, (batch, seq, d_model), jnp.float32)
    w1, b1, w2, b2 = init_params(kp, d_model, d_ff)
    y = jax.block_until_ready(position_wise_ffn(x, w1, b1, w2, b2))
    ref = jnp.maximum(x @ w1 + b1, 0.0) @ w2 + b2
    assert y.shape == (batch, seq, d_model)
    assert jnp.allclose(y, ref, atol=1e-5, rtol=1e-5)

    # 2) 128-multiple features, M=160 (not a tile multiple): auto plan keeps
    #    the weights VMEM-resident and uses a single 160-row tile (no padded
    #    MXU work).
    d_model2, d_ff2 = 128, 256
    batch2, seq2 = 2, 80
    x2 = jax.random.normal(kx2, (batch2, seq2, d_model2), jnp.float32)
    w1b, b1b, w2b, b2b = init_params(kp2, d_model2, d_ff2)
    y2 = jax.block_until_ready(position_wise_ffn(x2, w1b, b1b, w2b, b2b))
    ref2 = jnp.maximum(x2 @ w1b + b1b, 0.0) @ w2b + b2b
    assert y2.shape == (batch2, seq2, d_model2)
    assert jnp.allclose(y2, ref2, atol=1e-3, rtol=1e-3)

    # 3) Forced streaming path (multi-tile d_ff reduction; f32 accumulation
    #    directly into the resident output block, no scratch).
    y3 = jax.block_until_ready(
        position_wise_ffn(x2, w1b, b1b, w2b, b2b, tm=128, tff=128,
                          force_stream=True))
    assert jnp.allclose(y3, ref2, atol=1e-3, rtol=1e-3)

    # 4) bf16 I/O + weights, forced streaming (exercises the f32 acc scratch
    #    and the 16-row sublane alignment).  Mixed precision: not bit-exact
    #    vs an f32 reference, so loose tolerance.
    xb = x2.astype(jnp.bfloat16)
    w1c, b1c, w2c, b2c = (a.astype(jnp.bfloat16) for a in (w1b, b1b, w2b, b2b))
    y4 = jax.block_until_ready(
        position_wise_ffn(xb, w1c, b1c, w2c, b2c, force_stream=True))
    h_ref = jnp.maximum(xb.astype(jnp.float32) @ w1c.astype(jnp.float32)
                        + b1c.astype(jnp.float32), 0.0)
    ref4 = (h_ref.astype(jnp.bfloat16).astype(jnp.float32)
            @ w2c.astype(jnp.float32) + b2c.astype(jnp.float32))
    assert y4.dtype == jnp.bfloat16
    assert jnp.allclose(y4.astype(jnp.float32), ref4, atol=0.15, rtol=0.15)

    print("KERNEL_OK")
</pallas_src>

<mosaic_0001>
module attributes {stable_mosaic.version = 11 : i64} {
  func.func @_ffn_resident_kernel(%arg0: i32, %arg1: memref<16x128xf32, #tpu.memory_space<vmem>>, %arg2: memref<128x128xf32, #tpu.memory_space<vmem>>, %arg3: memref<1x128xf32, #tpu.memory_space<vmem>>, %arg4: memref<128x128xf32, #tpu.memory_space<vmem>>, %arg5: memref<1x128xf32, #tpu.memory_space<vmem>>, %arg6: memref<16x128xf32, #tpu.memory_space<vmem>>) attributes {dimension_semantics = [#tpu.dimension_semantics<parallel>], iteration_bounds = array<i64: 1>, scalar_prefetch = 0 : i64, scratch_operands = 0 : i64, tpu.core_type = #tpu.core_type<tc>, window_params = [{transform_indices = @transform_0, window_bounds = array<i64: 16, 128>}, {pipeline_mode = #tpu.pipeline_mode<synchronous>, transform_indices = @transform_1, window_bounds = array<i64: 128, 128>}, {pipeline_mode = #tpu.pipeline_mode<synchronous>, transform_indices = @transform_2, window_bounds = array<i64: 1, 128>}, {pipeline_mode = #tpu.pipeline_mode<synchronous>, transform_indices = @transform_3, window_bounds = array<i64: 128, 128>}, {pipeline_mode = #tpu.pipeline_mode<synchronous>, transform_indices = @transform_4, window_bounds = array<i64: 1, 128>}, {transform_indices = @transform_5, window_bounds = array<i64: 16, 128>}]} {
    %c0 = arith.constant 0 : index
    %c0_0 = arith.constant 0 : index
    %0 = vector.load %arg1[%c0, %c0_0] : memref<16x128xf32, #tpu.memory_space<vmem>>, vector<16x128xf32>
    %c0_1 = arith.constant 0 : index
    %c0_2 = arith.constant 0 : index
    %1 = vector.load %arg2[%c0_1, %c0_2] : memref<128x128xf32, #tpu.memory_space<vmem>>, vector<128x128xf32>
    %cst = arith.constant dense<0.000000e+00> : vector<16x128xf32>
    %2 = tpu.matmul %0, %1, %cst {dimension_numbers = #tpu.dot_dimension_numbers<[1], [0], [0], [1], [0, 0, 1, 1], [], []>} : vector<16x128xf32>, vector<128x128xf32>, vector<16x128xf32> -> vector<16x128xf32>
    %c0_3 = arith.constant 0 : index
    %c0_4 = arith.constant 0 : index
    %3 = vector.load %arg3[%c0_3, %c0_4] : memref<1x128xf32, #tpu.memory_space<vmem>>, vector<1x128xf32>
    %4 = vector.broadcast %3 : vector<1x128xf32> to vector<16x128xf32>
    %5 = arith.addf %2, %4 : vector<16x128xf32>
    %cst_5 = arith.constant 0.000000e+00 : f32
    %6 = vector.broadcast %cst_5 : f32 to vector<16x128xf32>
    %7 = arith.maximumf %5, %6 : vector<16x128xf32>
    %c0_6 = arith.constant 0 : index
    %c0_7 = arith.constant 0 : index
    %8 = vector.load %arg4[%c0_6, %c0_7] : memref<128x128xf32, #tpu.memory_space<vmem>>, vector<128x128xf32>
    %cst_8 = arith.constant dense<0.000000e+00> : vector<16x128xf32>
    %9 = tpu.matmul %7, %8, %cst_8 {dimension_numbers = #tpu.dot_dimension_numbers<[1], [0], [0], [1], [0, 0, 1, 1], [], []>} : vector<16x128xf32>, vector<128x128xf32>, vector<16x128xf32> -> vector<16x128xf32>
    %c0_9 = arith.constant 0 : index
    %c0_10 = arith.constant 0 : index
    %10 = vector.load %arg5[%c0_9, %c0_10] : memref<1x128xf32, #tpu.memory_space<vmem>>, vector<1x128xf32>
    %11 = vector.broadcast %10 : vector<1x128xf32> to vector<16x128xf32>
    %12 = arith.addf %9, %11 : vector<16x128xf32>
    %c0_11 = arith.constant 0 : index
    %c0_12 = arith.constant 0 : index
    %13 = vector.load %arg6[%c0_11, %c0_12] : memref<16x128xf32, #tpu.memory_space<vmem>>, vector<16x128xf32>
    tpu.vector_store %arg6[%c0_11, %c0_12], %12 {strides = array<i32>} : memref<16x128xf32, #tpu.memory_space<vmem>>, vector<16x128xf32>,
    return
  }
  func.func @transform_0(%arg0: i32) -> (i32, i32) {
    %c0_i32 = arith.constant 0 : i32
    %c0_i32_0 = arith.constant 0 : i32
    return %arg0, %c0_i32 : i32, i32
  }
  func.func @transform_1(%arg0: i32) -> (i32, i32) {
    %c0_i32 = arith.constant 0 : i32
    %c0_i32_0 = arith.constant 0 : i32
    %c0_i32_1 = arith.constant 0 : i32
    return %c0_i32, %c0_i32_0 : i32, i32
  }
  func.func @transform_2(%arg0: i32) -> (i32, i32) {
    %c0_i32 = arith.constant 0 : i32
    %c0_i32_0 = arith.constant 0 : i32
    %c0_i32_1 = arith.constant 0 : i32
    return %c0_i32, %c0_i32_0 : i32, i32
  }
  func.func @transform_3(%arg0: i32) -> (i32, i32) {
    %c0_i32 = arith.constant 0 : i32
    %c0_i32_0 = arith.constant 0 : i32
    %c0_i32_1 = arith.constant 0 : i32
    return %c0_i32, %c0_i32_0 : i32, i32
  }
  func.func @transform_4(%arg0: i32) -> (i32, i32) {
    %c0_i32 = arith.constant 0 : i32
    %c0_i32_0 = arith.constant 0 : i32
    %c0_i32_1 = arith.constant 0 : i32
    return %c0_i32, %c0_i32_0 : i32, i32
  }
  func.func @transform_5(%arg0: i32) -> (i32, i32) {
    %c0_i32 = arith.constant 0 : i32
    %c0_i32_0 = arith.constant 0 : i32
    return %arg0, %c0_i32 : i32, i32
  }
}

</mosaic_0001>

<llo_original>
// kernel: position_wise_ffn.1
$region0: #{position_wise_ffn.1}
  #allocation0 [shape = 'u32[]', space=smem, size = 0x4, offset = 0x4, fixed_abs, tag = 'smem constant byte address 0x4 - core index']
  #allocation1 [shape = 'u32[72,128]{1,0:T(1,128)}', space=vmem, size = 0x9000, scoped, tag = 'internal scratch']
  %s0 = inlined_call_operand.vmem [shape: f32[16,128], index: 0, kind: input, shape index: {}]
  %s1 = inlined_call_operand.vmem [shape: f32[128,128], index: 1, kind: input, shape index: {}]
  %s2 = inlined_call_operand.vmem [shape: f32[1,128], index: 2, kind: input, shape index: {}]
  %s3 = inlined_call_operand.vmem [shape: f32[128,128], index: 3, kind: input, shape index: {}]
  %s4 = inlined_call_operand.vmem [shape: f32[1,128], index: 4, kind: input, shape index: {}]
  %s5 = inlined_call_operand.vmem [shape: f32[16,128], index: 5, kind: output, shape index: {}]
  %s6 = sld [smem:[#allocation0]]
  $region30: #{position_wise_ffn.1} parent=0
    _
  %s8 = ssub.s32 1, %s6
  %s9 = scalar_select 0, %s8, %s6
  // Predicated region
  $region2: #{position_wise_ffn.1} parent=0 // pred_check
    _
  $region3: #{position_wise_ffn.1} parent=0 // pred_check_branch
    %11 = sbr.rel (0) target = $region5
  $region4: #{position_wise_ffn.1} parent=0 // pred_region
    _
  $region5: #{position_wise_ffn.1} parent=0 // pred_fallthru
    _
  // Predicated region
  $region6: #{position_wise_ffn.1} parent=0 // pred_check
    _
  $region7: #{position_wise_ffn.1} parent=0 // pred_check_branch
    %13 = sbr.rel (0) target = $region9
  $region8: #{position_wise_ffn.1} parent=0 // pred_region
    _
  $region9: #{position_wise_ffn.1} parent=0 // pred_fallthru
    _
  // Predicated region
  $region10: #{position_wise_ffn.1} parent=0 // pred_check
    _
  $region11: #{position_wise_ffn.1} parent=0 // pred_check_branch
    %15 = sbr.rel (0) target = $region13
  $region12: #{position_wise_ffn.1} parent=0 // pred_region
    _
  $region13: #{position_wise_ffn.1} parent=0 // pred_fallthru
    _
  // Predicated region
  $region14: #{position_wise_ffn.1} parent=0 // pred_check
    _
  $region15: #{position_wise_ffn.1} parent=0 // pred_check_branch
    %17 = sbr.rel (0) target = $region17
  $region16: #{position_wise_ffn.1} parent=0 // pred_region
    _
  $region17: #{position_wise_ffn.1} parent=0 // pred_fallthru
    _
  // Predicated region
  $region18: #{position_wise_ffn.1} parent=0 // pred_check
    _
  $region19: #{position_wise_ffn.1} parent=0 // pred_check_branch
    %19 = sbr.rel (0) target = $region21
  $region20: #{position_wise_ffn.1} parent=0 // pred_region
    _
  $region21: #{position_wise_ffn.1} parent=0 // pred_fallthru
    _
  %v20 = vld [vmem:[%s0] sm:$0xff]
  %v21 = vld [vmem:[%s0 + $0x8] sm:$0xff]
  %v22 = vld [vmem:[%s1] sm:$0xff]
  %v23 = vld [vmem:[%s1 + $0x8] sm:$0xff]
  %v24 = vld [vmem:[%s1 + $0x10] sm:$0xff]
  %v25 = vld [vmem:[%s1 + $0x18] sm:$0xff]
  %v26 = vld [vmem:[%s1 + $0x20] sm:$0xff]
  %v27 = vld [vmem:[%s1 + $0x28] sm:$0xff]
  %v28 = vld [vmem:[%s1 + $0x30] sm:$0xff]
  %v29 = vld [vmem:[%s1 + $0x38] sm:$0xff]
  %v30 = vld [vmem:[%s1 + $0x40] sm:$0xff]
  %v31 = vld [vmem:[%s1 + $0x48] sm:$0xff]
  %v32 = vld [vmem:[%s1 + $0x50] sm:$0xff]
  %v33 = vld [vmem:[%s1 + $0x58] sm:$0xff]
  %v34 = vld [vmem:[%s1 + $0x60] sm:$0xff]
  %v35 = vld [vmem:[%s1 + $0x68] sm:$0xff]
  %v36 = vld [vmem:[%s1 + $0x70] sm:$0xff]
  %v37 = vld [vmem:[%s1 + $0x78] sm:$0xff]
  %v38 = vld [vmem:[%s2] sm:$0x1]
  %v40 = vperm.slane %v38, 0
  %42 = vmatpush.msra.mxu0 %v37
  %43 = vmatpush.msra.mxu0 %v36
  %44 = vmatpush.msra.mxu0 %v35
  %45 = vmatpush.msra.mxu0 %v34
  %46 = vmatpush.msra.mxu0 %v33
  %47 = vmatpush.msra.mxu0 %v32
  %48 = vmatpush.msra.mxu0 %v31
  %49 = vmatpush.msra.mxu0 %v30
  %50 = vmatpush.msra.mxu0 %v29
  %51 = vmatpush.msra.mxu0 %v28
  %52 = vmatpush.msra.mxu0 %v27
  %53 = vmatpush.msra.mxu0 %v26
  %54 = vmatpush.msra.mxu0 %v25
  %55 = vmatpush.msra.mxu0 %v24
  %56 = vmatpush.msra.mxu0 %v23
  %57 = vmatpush.msra.mxu0 %v22
  %58 = vmatmul.f32.gmra.mxu0 %v20
  %v59 = vpop.f32.mrf.mxu0
  %v60 = vadd.f32 %v40, %v59
  %61 = vmatmul.f32.gmra.mxu0 %v21
  %v62 = vpop.f32.mrf.mxu0
  %v63 = vadd.f32 %v40, %v62
  %64 = vdwg.mxu0
  %v65 = vmax.f32 %v60, 0.0
  %v66 = vmax.f32 %v63, 0.0
  %v67 = vld [vmem:[%s3] sm:$0xff]
  %v68 = vld [vmem:[%s3 + $0x8] sm:$0xff]
  %v69 = vld [vmem:[%s3 + $0x10] sm:$0xff]
  %v70 = vld [vmem:[%s3 + $0x18] sm:$0xff]
  %v71 = vld [vmem:[%s3 + $0x20] sm:$0xff]
  %v72 = vld [vmem:[%s3 + $0x28] sm:$0xff]
  %v73 = vld [vmem:[%s3 + $0x30] sm:$0xff]
  %v74 = vld [vmem:[%s3 + $0x38] sm:$0xff]
  %v75 = vld [vmem:[%s3 + $0x40] sm:$0xff]
  %v76 = vld [vmem:[%s3 + $0x48] sm:$0xff]
  %v77 = vld [vmem:[%s3 + $0x50] sm:$0xff]
  %v78 = vld [vmem:[%s3 + $0x58] sm:$0xff]
  %v79 = vld [vmem:[%s3 + $0x60] sm:$0xff]
  %v80 = vld [vmem:[%s3 + $0x68] sm:$0xff]
  %v81 = vld [vmem:[%s3 + $0x70] sm:$0xff]
  %v82 = vld [vmem:[%s3 + $0x78] sm:$0xff]
  %v83 = vld [vmem:[%s4] sm:$0x1]
  %v85 = vperm.slane %v83, 0
  %87 = vmatpush.msra.mxu0 %v82
  %88 = vmatpush.msra.mxu0 %v81
  %89 = vmatpush.msra.mxu0 %v80
  %90 = vmatpush.msra.mxu0 %v79
  %91 = vmatpush.msra.mxu0 %v78
  %92 = vmatpush.msra.mxu0 %v77
  %93 = vmatpush.msra.mxu0 %v76
  %94 = vmatpush.msra.mxu0 %v75
  %95 = vmatpush.msra.mxu0 %v74
  %96 = vmatpush.msra.mxu0 %v73
  %97 = vmatpush.msra.mxu0 %v72
  %98 = vmatpush.msra.mxu0 %v71
  %99 = vmatpush.msra.mxu0 %v70
  %100 = vmatpush.msra.mxu0 %v69
  %101 = vmatpush.msra.mxu0 %v68
  %102 = vmatpush.msra.mxu0 %v67
  %103 = vmatmul.f32.gmra.mxu0 %v65
  %v104 = vpop.f32.mrf.mxu0
  %v105 = vadd.f32 %v85, %v104
  %106 = vmatmul.f32.gmra.mxu0 %v66
  %v107 = vpop.f32.mrf.mxu0
  %v108 = vadd.f32 %v85, %v107
  %109 = vdwg.mxu0
  %110 = vst [vmem:[%s5] sm:$0xff] %v105
  %111 = vst [vmem:[%s5 + $0x8] sm:$0xff] %v108
  // Predicated region
  $region22: #{position_wise_ffn.1} parent=0 // pred_check
    _
  $region23: #{position_wise_ffn.1} parent=0 // pred_check_branch
    %113 = sbr.rel (0) target = $region25
  $region24: #{position_wise_ffn.1} parent=0 // pred_region
    _
  $region25: #{position_wise_ffn.1} parent=0 // pred_fallthru
    _
  // Predicated region
  $region26: #{position_wise_ffn.1} parent=0 // pred_check
    _
  $region27: #{position_wise_ffn.1} parent=0 // pred_check_branch
    %115 = sbr.rel (0) target = $region29
  $region28: #{position_wise_ffn.1} parent=0 // pred_region
    _
  $region29: #{position_wise_ffn.1} parent=0 // pred_fallthru
    _

</llo_original>
